<compile_context>
chip_gen: v7x
topology: tpu7x:2x2x1
jax: 0.10.0
libtpu: 0.0.40
codegen_flags: <defaults>
</compile_context>

<pallas_src>
import functools

import jax
import jax.numpy as jnp
from jax.experimental import pallas as pl
from jax.experimental.pallas import tpu as pltpu


def _round_up(x, m):
    return pl.cdiv(x, m) * m


# ---------------------------------------------------------------------------
# Pass 1: tiled matmul (MXU, bf16 -> f32) + per-channel sum / sum-of-squares.
# ---------------------------------------------------------------------------
def conv_stats_kernel(x_ref, w_ref, y_ref, sum_ref, sq_ref):
    # sum_ref / sq_ref are resident accumulators across the M-tile axis.
    @pl.when(pl.program_id(1) == 0)
    def _init():
        sum_ref[...] = jnp.zeros_like(sum_ref)
        sq_ref[...] = jnp.zeros_like(sq_ref)

    y = jnp.dot(x_ref[...], w_ref[...], preferred_element_type=jnp.float32)
    y_ref[...] = y.astype(y_ref.dtype)

    # Per-sublane partial sums: [TM, C] -> [TM//8, 8, C], reduce the leading
    # axis (pure VALU adds). The single cross-sublane reduce is done outside.
    tm, c = y.shape
    y3 = y.reshape(tm // 8, 8, c)
    sum_ref[...] = sum_ref[...] + jnp.sum(y3, axis=0)
    sq_ref[...] = sq_ref[...] + jnp.sum(y3 * y3, axis=0)


# ---------------------------------------------------------------------------
# Pass 2: folded BatchNorm (y*a + b) + LeakyReLU(0.2).
# ---------------------------------------------------------------------------
def bn_act_kernel(y_ref, a_ref, b_ref, o_ref):
    y = y_ref[...].astype(jnp.float32)
    out = y * a_ref[...] + b_ref[...]
    o_ref[...] = jnp.where(out >= 0, out, 0.2 * out).astype(o_ref.dtype)


def _im2col(x, ks, stride, pad):
    """x: [N, C, H, W] -> patches [N*Ho*Wo, C*ks*ks], plus (Ho, Wo)."""
    n, c, h, w = x.shape
    xp = jnp.pad(x, ((0, 0), (0, 0), (pad, pad), (pad, pad)))
    ho = (h + 2 * pad - ks) // stride + 1
    wo = (w + 2 * pad - ks) // stride + 1
    cols = []
    for kh in range(ks):
        for kw in range(ks):
            sl = xp[:, :, kh:kh + stride * ho:stride, kw:kw + stride * wo:stride]
            cols.append(sl)  # [N, C, Ho, Wo]
    patches = jnp.stack(cols, axis=0)                  # [ks*ks, N, C, Ho, Wo]
    patches = jnp.transpose(patches, (1, 3, 4, 2, 0))  # [N, Ho, Wo, C, ks*ks]
    return patches.reshape(n * ho * wo, c * ks * ks), ho, wo


@functools.partial(jax.jit,
                   static_argnames=("ks", "stride", "pad", "tm", "msplit"))
def conv_block_forward(x, weight, gamma, beta, *, ks, stride, pad,
                       tm=256, msplit=2):
    """ConvBlock forward. x: [N,Cin,H,W]; weight: [Cout,Cin,ks,ks] -> NCHW out."""
    assert tm % 8 == 0
    n, cin, h, w = x.shape
    cout = weight.shape[0]

    # im2col in bf16 (halves the HBM footprint of the expanded patches stream).
    patches, ho, wo = _im2col(x.astype(jnp.bfloat16), ks, stride, pad)   # [M, K]
    m, k = patches.shape

    cpad = _round_up(cout, 128)                 # lane-dense Cout
    m_pad = _round_up(m, tm * msplit)           # rows split evenly over cores
    tiles_per_split = m_pad // (tm * msplit)

    # Zero padding: padded rows/cols contribute 0 to sum & sumsq, so dividing
    # by the true M keeps the BatchNorm statistics exact.
    patches = jnp.pad(patches, ((0, m_pad - m), (0, 0)))
    w_mat = weight.reshape(cout, k).T                                    # [K, Cout]
    w_mat = jnp.pad(w_mat, ((0, 0), (0, cpad - cout))).astype(jnp.bfloat16)

    def x_map(c, i):
        return (c * tiles_per_split + i, 0)

    def w_map(c, i):
        return (0, 0)

    def stats_map(c, i):
        return (c, 0)

    bytes_p1 = (m_pad * k * 2 + k * cpad * 2 + m_pad * cpad * 2
                + 2 * msplit * 8 * cpad * 4)

    y, psum, psq = pl.pallas_call(
        conv_stats_kernel,
        out_shape=(
            jax.ShapeDtypeStruct((m_pad, cpad), jnp.bfloat16),
            jax.ShapeDtypeStruct((msplit * 8, cpad), jnp.float32),
            jax.ShapeDtypeStruct((msplit * 8, cpad), jnp.float32),
        ),
        grid_spec=pltpu.PrefetchScalarGridSpec(
            num_scalar_prefetch=0,
            grid=(msplit, tiles_per_split),
            in_specs=[
                pl.BlockSpec((tm, k), x_map),
                pl.BlockSpec((k, cpad), w_map),
            ],
            out_specs=(
                pl.BlockSpec((tm, cpad), x_map),
                pl.BlockSpec((8, cpad), stats_map),
                pl.BlockSpec((8, cpad), stats_map),
            ),
        ),
        compiler_params=pltpu.CompilerParams(
            dimension_semantics=("parallel", "arbitrary"),
            vmem_limit_bytes=48 << 20,
        ),
        cost_estimate=pl.CostEstimate(
            flops=2 * m_pad * k * cpad,
            transcendentals=0,
            bytes_accessed=bytes_p1,
        ),
    )(patches, w_mat)

    # Finalize BN statistics (global over the whole batch) and fold gamma/beta.
    csum = jnp.sum(psum, axis=0)                     # [Cpad]
    csq = jnp.sum(psq, axis=0)                       # [Cpad]
    mean = csum / m
    var = csq / m - mean * mean                      # biased var (PyTorch BN fwd)
    gamma_p = jnp.pad(gamma.astype(jnp.float32), (0, cpad - cout))
    beta_p = jnp.pad(beta.astype(jnp.float32), (0, cpad - cout))
    a = gamma_p * jax.lax.rsqrt(var + 1e-5)
    b = beta_p - mean * a
    a2 = a.reshape(1, cpad)
    b2 = b.reshape(1, cpad)

    out_flat = pl.pallas_call(
        bn_act_kernel,
        out_shape=jax.ShapeDtypeStruct((m_pad, cpad), jnp.float32),
        grid_spec=pltpu.PrefetchScalarGridSpec(
            num_scalar_prefetch=0,
            grid=(m_pad // tm,),
            in_specs=[
                pl.BlockSpec((tm, cpad), lambda i: (i, 0)),
                pl.BlockSpec((1, cpad), lambda i: (0, 0)),
                pl.BlockSpec((1, cpad), lambda i: (0, 0)),
            ],
            out_specs=pl.BlockSpec((tm, cpad), lambda i: (i, 0)),
        ),
        compiler_params=pltpu.CompilerParams(
            dimension_semantics=("parallel",),
            vmem_limit_bytes=48 << 20,
        ),
        cost_estimate=pl.CostEstimate(
            flops=2 * m_pad * cpad,
            transcendentals=0,
            bytes_accessed=m_pad * cpad * 2 + m_pad * cpad * 4,
        ),
    )(y, a2, b2)

    out = out_flat[:m, :cout].reshape(n, ho, wo, cout)
    return jnp.transpose(out, (0, 3, 1, 2))          # NHWC -> NCHW


if __name__ == "__main__":
    # ConvBlock(ni=4, no=8, ks=3, stride=1) -> pad = 3 // 2 // 1 = 1
    N, CIN, H, W = 2, 4, 16, 16
    COUT, KS, STRIDE = 8, 3, 1
    PAD = KS // 2 // STRIDE

    key = jax.random.PRNGKey(0)
    kx, kw = jax.random.split(key)
    x = jax.random.normal(kx, (N, CIN, H, W), dtype=jnp.float32)
    weight = jax.random.normal(kw, (COUT, CIN, KS, KS), dtype=jnp.float32) * 0.1
    gamma = jnp.ones((COUT,), dtype=jnp.float32)   # BatchNorm affine weight
    beta = jnp.zeros((COUT,), dtype=jnp.float32)   # BatchNorm affine bias

    out = conv_block_forward(x, weight, gamma, beta, ks=KS, stride=STRIDE, pad=PAD)
    out = jax.block_until_ready(out)

    # Reference in plain JAX/f32: conv -> batchnorm(batch stats) -> leakyrelu.
    # (Kernel uses bf16 MXU inputs + a bf16 y intermediate, so allow ~1e-2
    # level differences.)
    ref_conv = jax.lax.conv_general_dilated(
        x, weight, window_strides=(STRIDE, STRIDE),
        padding=((PAD, PAD), (PAD, PAD)),
        dimension_numbers=("NCHW", "OIHW", "NCHW"))
    mean = jnp.mean(ref_conv, axis=(0, 2, 3), keepdims=True)
    var = jnp.var(ref_conv, axis=(0, 2, 3), keepdims=True)
    ref_bn = (ref_conv - mean) * jax.lax.rsqrt(var + 1e-5)
    ref = jnp.where(ref_bn >= 0, ref_bn, 0.2 * ref_bn)

    assert out.shape == (N, COUT, H, W), out.shape
    err = float(jnp.max(jnp.abs(out - ref)))
    assert err < 5e-2, err
    print("KERNEL_OK")
</pallas_src>

<mosaic_0001>
module attributes {stable_mosaic.version = 11 : i64} {
  func.func @conv_stats_kernel(%arg0: i32, %arg1: i32, %arg2: memref<256x36xbf16, #tpu.memory_space<vmem>>, %arg3: memref<36x128xbf16, #tpu.memory_space<vmem>>, %arg4: memref<256x128xbf16, #tpu.memory_space<vmem>>, %arg5: memref<8x128xf32, #tpu.memory_space<vmem>>, %arg6: memref<8x128xf32, #tpu.memory_space<vmem>>) attributes {dimension_semantics = [#tpu.dimension_semantics<parallel>, #tpu.dimension_semantics<arbitrary>], iteration_bounds = array<i64: 2, 1>, scalar_prefetch = 0 : i64, scratch_operands = 0 : i64, tpu.core_type = #tpu.core_type<tc>, window_params = [{transform_indices = @transform_0, window_bounds = array<i64: 256, 36>}, {pipeline_mode = #tpu.pipeline_mode<synchronous>, transform_indices = @transform_1, window_bounds = array<i64: 36, 128>}, {transform_indices = @transform_2, window_bounds = array<i64: 256, 128>}, {transform_indices = @transform_3, window_bounds = array<i64: 8, 128>}, {transform_indices = @transform_4, window_bounds = array<i64: 8, 128>}]} {
    %c0_i32 = arith.constant 0 : i32
    %0 = arith.cmpi eq, %arg1, %c0_i32 : i32
    %1 = arith.extui %0 : i1 to i32
    %c0_i32_0 = arith.constant 0 : i32
    %2 = arith.cmpi ne, %1, %c0_i32_0 : i32
    scf.if %2 {
      %cst_16 = arith.constant 0.000000e+00 : f32
      %18 = vector.broadcast %cst_16 : f32 to vector<8x128xf32>
      %c0_17 = arith.constant 0 : index
      %c0_18 = arith.constant 0 : index
      %19 = vector.load %arg5[%c0_17, %c0_18] : memref<8x128xf32, #tpu.memory_space<vmem>>, vector<8x128xf32>
      tpu.vector_store %arg5[%c0_17, %c0_18], %18 {strides = array<i32>} : memref<8x128xf32, #tpu.memory_space<vmem>>, vector<8x128xf32>,
      %cst_19 = arith.constant 0.000000e+00 : f32
      %20 = vector.broadcast %cst_19 : f32 to vector<8x128xf32>
      %c0_20 = arith.constant 0 : index
      %c0_21 = arith.constant 0 : index
      %21 = vector.load %arg6[%c0_20, %c0_21] : memref<8x128xf32, #tpu.memory_space<vmem>>, vector<8x128xf32>
      tpu.vector_store %arg6[%c0_20, %c0_21], %20 {strides = array<i32>} : memref<8x128xf32, #tpu.memory_space<vmem>>, vector<8x128xf32>,
    } else {
    }
    %c0 = arith.constant 0 : index
    %c0_1 = arith.constant 0 : index
    %3 = vector.load %arg2[%c0, %c0_1] : memref<256x36xbf16, #tpu.memory_space<vmem>>, vector<256x36xbf16>
    %c0_2 = arith.constant 0 : index
    %c0_3 = arith.constant 0 : index
    %4 = vector.load %arg3[%c0_2, %c0_3] : memref<36x128xbf16, #tpu.memory_space<vmem>>, vector<36x128xbf16>
    %cst = arith.constant dense<0.000000e+00> : vector<256x128xf32>
    %5 = tpu.matmul %3, %4, %cst {dimension_numbers = #tpu.dot_dimension_numbers<[1], [0], [0], [1], [0, 0, 1, 1], [], []>} : vector<256x36xbf16>, vector<36x128xbf16>, vector<256x128xf32> -> vector<256x128xf32>
    %6 = arith.truncf %5 : vector<256x128xf32> to vector<256x128xbf16>
    %c0_4 = arith.constant 0 : index
    %c0_5 = arith.constant 0 : index
    %7 = vector.load %arg4[%c0_4, %c0_5] : memref<256x128xbf16, #tpu.memory_space<vmem>>, vector<256x128xbf16>
    tpu.vector_store %arg4[%c0_4, %c0_5], %6 {strides = array<i32>} : memref<256x128xbf16, #tpu.memory_space<vmem>>, vector<256x128xbf16>,
    %8 = vector.shape_cast %5 : vector<256x128xf32> to vector<32x8x128xf32>
    %c0_6 = arith.constant 0 : index
    %c0_7 = arith.constant 0 : index
    %9 = vector.load %arg5[%c0_6, %c0_7] : memref<8x128xf32, #tpu.memory_space<vmem>>, vector<8x128xf32>
    %cst_8 = arith.constant dense<0.000000e+00> : vector<8x128xf32>
    %10 = vector.multi_reduction <add>, %8, %cst_8 [0] : vector<32x8x128xf32> to vector<8x128xf32>
    %11 = arith.addf %9, %10 : vector<8x128xf32>
    %c0_9 = arith.constant 0 : index
    %c0_10 = arith.constant 0 : index
    %12 = vector.load %arg5[%c0_9, %c0_10] : memref<8x128xf32, #tpu.memory_space<vmem>>, vector<8x128xf32>
    tpu.vector_store %arg5[%c0_9, %c0_10], %11 {strides = array<i32>} : memref<8x128xf32, #tpu.memory_space<vmem>>, vector<8x128xf32>,
    %c0_11 = arith.constant 0 : index
    %c0_12 = arith.constant 0 : index
    %13 = vector.load %arg6[%c0_11, %c0_12] : memref<8x128xf32, #tpu.memory_space<vmem>>, vector<8x128xf32>
    %14 = arith.mulf %8, %8 : vector<32x8x128xf32>
    %cst_13 = arith.constant dense<0.000000e+00> : vector<8x128xf32>
    %15 = vector.multi_reduction <add>, %14, %cst_13 [0] : vector<32x8x128xf32> to vector<8x128xf32>
    %16 = arith.addf %13, %15 : vector<8x128xf32>
    %c0_14 = arith.constant 0 : index
    %c0_15 = arith.constant 0 : index
    %17 = vector.load %arg6[%c0_14, %c0_15] : memref<8x128xf32, #tpu.memory_space<vmem>>, vector<8x128xf32>
    tpu.vector_store %arg6[%c0_14, %c0_15], %16 {strides = array<i32>} : memref<8x128xf32, #tpu.memory_space<vmem>>, vector<8x128xf32>,
    return
  }
  func.func @transform_0(%arg0: i32, %arg1: i32) -> (i32, i32) {
    %c1_i32 = arith.constant 1 : i32
    %0 = arith.muli %arg0, %c1_i32 : i32
    %1 = arith.addi %0, %arg1 : i32
    %c0_i32 = arith.constant 0 : i32
    %c0_i32_0 = arith.constant 0 : i32
    return %1, %c0_i32 : i32, i32
  }
  func.func @transform_1(%arg0: i32, %arg1: i32) -> (i32, i32) {
    %c0_i32 = arith.constant 0 : i32
    %c0_i32_0 = arith.constant 0 : i32
    %c0_i32_1 = arith.constant 0 : i32
    return %c0_i32, %c0_i32_0 : i32, i32
  }
  func.func @transform_2(%arg0: i32, %arg1: i32) -> (i32, i32) {
    %c1_i32 = arith.constant 1 : i32
    %0 = arith.muli %arg0, %c1_i32 : i32
    %1 = arith.addi %0, %arg1 : i32
    %c0_i32 = arith.constant 0 : i32
    %c0_i32_0 = arith.constant 0 : i32
    return %1, %c0_i32 : i32, i32
  }
  func.func @transform_3(%arg0: i32, %arg1: i32) -> (i32, i32) {
    %c0_i32 = arith.constant 0 : i32
    %c0_i32_0 = arith.constant 0 : i32
    return %arg0, %c0_i32 : i32, i32
  }
  func.func @transform_4(%arg0: i32, %arg1: i32) -> (i32, i32) {
    %c0_i32 = arith.constant 0 : i32
    %c0_i32_0 = arith.constant 0 : i32
    return %arg0, %c0_i32 : i32, i32
  }
}

module attributes {stable_mosaic.version = 11 : i64} {
  func.func @bn_act_kernel(%arg0: i32, %arg1: memref<256x128xbf16, #tpu.memory_space<vmem>>, %arg2: memref<1x128xf32, #tpu.memory_space<vmem>>, %arg3: memref<1x128xf32, #tpu.memory_space<vmem>>, %arg4: memref<256x128xf32, #tpu.memory_space<vmem>>) attributes {dimension_semantics = [#tpu.dimension_semantics<parallel>], iteration_bounds = array<i64: 2>, scalar_prefetch = 0 : i64, scratch_operands = 0 : i64, tpu.core_type = #tpu.core_type<tc>, window_params = [{transform_indices = @transform_0, window_bounds = array<i64: 256, 128>}, {pipeline_mode = #tpu.pipeline_mode<synchronous>, transform_indices = @transform_1, window_bounds = array<i64: 1, 128>}, {pipeline_mode = #tpu.pipeline_mode<synchronous>, transform_indices = @transform_2, window_bounds = array<i64: 1, 128>}, {transform_indices = @transform_3, window_bounds = array<i64: 256, 128>}]} {
    %c0 = arith.constant 0 : index
    %c0_0 = arith.constant 0 : index
    %0 = vector.load %arg1[%c0, %c0_0] : memref<256x128xbf16, #tpu.memory_space<vmem>>, vector<256x128xbf16>
    %1 = arith.extf %0 : vector<256x128xbf16> to vector<256x128xf32>
    %c0_1 = arith.constant 0 : index
    %c0_2 = arith.constant 0 : index
    %2 = vector.load %arg2[%c0_1, %c0_2] : memref<1x128xf32, #tpu.memory_space<vmem>>, vector<1x128xf32>
    %3 = vector.broadcast %2 : vector<1x128xf32> to vector<256x128xf32>
    %4 = arith.mulf %1, %3 : vector<256x128xf32>
    %c0_3 = arith.constant 0 : index
    %c0_4 = arith.constant 0 : index
    %5 = vector.load %arg3[%c0_3, %c0_4] : memref<1x128xf32, #tpu.memory_space<vmem>>, vector<1x128xf32>
    %6 = vector.broadcast %5 : vector<1x128xf32> to vector<256x128xf32>
    %7 = arith.addf %4, %6 : vector<256x128xf32>
    %cst = arith.constant 0.000000e+00 : f32
    %8 = vector.broadcast %cst : f32 to vector<256x128xf32>
    %9 = arith.cmpf oge, %7, %8 : vector<256x128xf32>
    %cst_5 = arith.constant 2.000000e-01 : f32
    %10 = vector.broadcast %cst_5 : f32 to vector<256x128xf32>
    %11 = arith.mulf %10, %7 : vector<256x128xf32>
    %12 = arith.select %9, %7, %11 : vector<256x128xi1>, vector<256x128xf32>
    %c0_6 = arith.constant 0 : index
    %c0_7 = arith.constant 0 : index
    %13 = vector.load %arg4[%c0_6, %c0_7] : memref<256x128xf32, #tpu.memory_space<vmem>>, vector<256x128xf32>
    tpu.vector_store %arg4[%c0_6, %c0_7], %12 {strides = array<i32>} : memref<256x128xf32, #tpu.memory_space<vmem>>, vector<256x128xf32>,
    return
  }
  func.func @transform_0(%arg0: i32) -> (i32, i32) {
    %c0_i32 = arith.constant 0 : i32
    %c0_i32_0 = arith.constant 0 : i32
    return %arg0, %c0_i32 : i32, i32
  }
  func.func @transform_1(%arg0: i32) -> (i32, i32) {
    %c0_i32 = arith.constant 0 : i32
    %c0_i32_0 = arith.constant 0 : i32
    %c0_i32_1 = arith.constant 0 : i32
    return %c0_i32, %c0_i32_0 : i32, i32
  }
  func.func @transform_2(%arg0: i32) -> (i32, i32) {
    %c0_i32 = arith.constant 0 : i32
    %c0_i32_0 = arith.constant 0 : i32
    %c0_i32_1 = arith.constant 0 : i32
    return %c0_i32, %c0_i32_0 : i32, i32
  }
  func.func @transform_3(%arg0: i32) -> (i32, i32) {
    %c0_i32 = arith.constant 0 : i32
    %c0_i32_0 = arith.constant 0 : i32
    return %arg0, %c0_i32 : i32, i32
  }
}

</mosaic_0001>

<llo_original>
// kernel: conv_block_forward.3
$region0: #{conv_block_forward.3}
  #allocation0 [shape = 'u32[]', space=smem, size = 0x4, offset = 0x4, fixed_abs, tag = 'smem constant byte address 0x4 - core index']
  #allocation1 [shape = 'u32[144,128]{1,0:T(1,128)}', space=vmem, size = 0x12000, scoped, tag = 'internal scratch']
  %s0 = inlined_call_operand.vmem [shape: bf16[512,128], index: 0, kind: input, shape index: {}]
  %s1 = inlined_call_operand.vmem [shape: f32[1,128], index: 1, kind: input, shape index: {}]
  %s2 = inlined_call_operand.vmem [shape: f32[1,128], index: 2, kind: input, shape index: {}]
  %s3 = inlined_call_operand.vmem [shape: f32[512,128], index: 3, kind: output, shape index: {}]
  %s4 = sld [smem:[#allocation0]]
  $region45: #{conv_block_forward.3} parent=0
    _
  %s6 = ssub.s32 1, %s4
  %s7 = scalar_select 0, %s6, %s4
  loop: start=0, step=1, limit=4
  $region2: #{conv_block_forward.3} parent=0 // loop_pre_header
    _
  $region3: #{conv_block_forward.3} parent=0 // loop_header
    %s9 = sphi 0, %s13
    %p10 = scmp.ge.s32.totalorder %s9, 4
    %s19 = sphi 0, %s21
    %s22 = sphi 0, %s19
    %s23 = sphi 0, %s22
    %s39 = sphi 0, %s23
    %s43 = sphi 0, %s43
    %s45 = sphi 0, %s43
    %s46 = sphi 0, %s45
    %s60 = sphi 0, %s46
    %s64 = sphi 0, %s64
    %s66 = sphi 0, %s64
    %s67 = sphi 0, %s66
    %s81 = sphi 0, %s67
    %s87 = sphi 0, %s89
    %s90 = sphi 0, %s87
    %s91 = sphi 0, %s90
    %s107 = sphi 0, %s91
  $region4: #{conv_block_forward.3} parent=0 // loop_header_branch
    %12 = sbr.rel (%p10) target = $region8
  $region5: #{conv_block_forward.3} parent=0 // loop_body
    %s14 = ssub.s32 %s9, 1
    %s15 = ssub.s32 %s9, 2
    %s16 = sadd.s32 %s9, 1
    %s17 = ssub.s32 %s9, %s16
    %p18 = scmp.eq.s32.totalorder %s17, 0
    %s20 = sadd.s32 %s19, 1
    %s21 = scalar_select %p18, %s19, %s20
    %p24 = pneg %p18
    %p25 = scmp.eq.s32.totalorder %s9, 1
    %p26 = por %p24, %p25
    %p27 = scmp.ne.s32.totalorder %s19, %s22
    %p28 = scmp.eq.s32.totalorder %s9, 0
    %p29 = por %p27, %p28
    %p30 = scmp.ne.s32.totalorder %s19, %s22
    %p31 = scmp.eq.s32.totalorder %s14, 1
    %p32 = por %p30, %p31
    %p33 = scmp.ne.s32.totalorder %s22, %s23
    %p34 = scmp.eq.s32.totalorder %s14, 0
    %p35 = por %p33, %p34
    %p36 = scmp.ne.s32.totalorder %s22, %s23
    %p37 = scmp.eq.s32.totalorder %s15, 1
    %p38 = por %p36, %p37
    %p40 = scmp.ne.s32.totalorder %s23, %s39
    %p41 = scmp.eq.s32.totalorder %s15, 0
    %p42 = por %p40, %p41
    %s44 = sadd.s32 %s43, 1
    %p47 = scmp.eq.s32.totalorder %s9, 1
    %p48 = scmp.ne.s32.totalorder %s43, %s45
    %p49 = scmp.eq.s32.totalorder %s9, 0
    %p50 = por %p48, %p49
    %p51 = scmp.ne.s32.totalorder %s43, %s45
    %p52 = scmp.eq.s32.totalorder %s14, 1
    %p53 = por %p51, %p52
    %p54 = scmp.ne.s32.totalorder %s45, %s46
    %p55 = scmp.eq.s32.totalorder %s14, 0
    %p56 = por %p54, %p55
    %p57 = scmp.ne.s32.totalorder %s45, %s46
    %p58 = scmp.eq.s32.totalorder %s15, 1
    %p59 = por %p57, %p58
    %p61 = scmp.ne.s32.totalorder %s46, %s60
    %p62 = scmp.eq.s32.totalorder %s15, 0
    %p63 = por %p61, %p62
    %s65 = sadd.s32 %s64, 1
    %p68 = scmp.eq.s32.totalorder %s9, 1
    %p69 = scmp.ne.s32.totalorder %s64, %s66
    %p70 = scmp.eq.s32.totalorder %s9, 0
    %p71 = por %p69, %p70
    %p72 = scmp.ne.s32.totalorder %s64, %s66
    %p73 = scmp.eq.s32.totalorder %s14, 1
    %p74 = por %p72, %p73
    %p75 = scmp.ne.s32.totalorder %s66, %s67
    %p76 = scmp.eq.s32.totalorder %s14, 0
    %p77 = por %p75, %p76
    %p78 = scmp.ne.s32.totalorder %s66, %s67
    %p79 = scmp.eq.s32.totalorder %s15, 1
    %p80 = por %p78, %p79
    %p82 = scmp.ne.s32.totalorder %s67, %s81
    %p83 = scmp.eq.s32.totalorder %s15, 0
    %p84 = por %p82, %p83
    %s85 = ssub.s32 %s9, %s16
    %p86 = scmp.eq.s32.totalorder %s85, 0
    %s88 = sadd.s32 %s87, 1
    %s89 = scalar_select %p86, %s87, %s88
    %p92 = pneg %p86
    %p93 = scmp.eq.s32.totalorder %s9, 1
    %p94 = por %p92, %p93
    %p95 = scmp.ne.s32.totalorder %s87, %s90
    %p96 = scmp.eq.s32.totalorder %s9, 0
    %p97 = por %p95, %p96
    %p98 = scmp.ne.s32.totalorder %s87, %s90
    %p99 = scmp.eq.s32.totalorder %s14, 1
    %p100 = por %p98, %p99
    %p101 = scmp.ne.s32.totalorder %s90, %s91
    %p102 = scmp.eq.s32.totalorder %s14, 0
    %p103 = por %p101, %p102
    %p104 = scmp.ne.s32.totalorder %s90, %s91
    %p105 = scmp.eq.s32.totalorder %s15, 1
    %p106 = por %p104, %p105
    %p108 = scmp.ne.s32.totalorder %s91, %s107
    %p109 = scmp.eq.s32.totalorder %s15, 0
    %p110 = por %p108, %p109
    %p111 = scmp.le.s32.totalorder 1, %s9
    %p112 = scmp.lt.s32.totalorder %s9, 3
    %p113 = pnand %p111, %p112
    %p114 = pneg %p113
    // Predicated region
    $region9: #{conv_block_forward.3} parent=5 // pred_check
      _
    $region10: #{conv_block_forward.3} parent=5 // pred_check_branch
      %116 = sbr.rel (%p113) target = $region12
    $region11: #{conv_block_forward.3} parent=5 // pred_region
      %s117 = ssub.s32 %s9, 1
      // Predicated region
      $region13: #{conv_block_forward.3} parent=11 // pred_check
        %p118 = pneg %p56
      $region14: #{conv_block_forward.3} parent=11 // pred_check_branch
        %120 = sbr.rel (%p118) target = $region16
      $region15: #{conv_block_forward.3} parent=11 // pred_region
        _
      $region16: #{conv_block_forward.3} parent=11 // pred_fallthru
        _
      // Predicated region
      $region17: #{conv_block_forward.3} parent=11 // pred_check
        %p121 = pneg %p77
      $region18: #{conv_block_forward.3} parent=11 // pred_check_branch
        %123 = sbr.rel (%p121) target = $region20
      $region19: #{conv_block_forward.3} parent=11 // pred_region
        _
      $region20: #{conv_block_forward.3} parent=11 // pred_fallthru
        _
    $region12: #{conv_block_forward.3} parent=5 // pred_fallthru
      _
    %p124 = scmp.lt.s32.totalorder %s9, 2
    // Predicated region
    $region21: #{conv_block_forward.3} parent=5 // pred_check
      %p125 = pneg %p124
    $region22: #{conv_block_forward.3} parent=5 // pred_check_branch
      %127 = sbr.rel (%p125) target = $region24
    $region23: #{conv_block_forward.3} parent=5 // pred_region
      // Predicated region
      $region25: #{conv_block_forward.3} parent=23 // pred_check
        %p128 = pneg %p29
      $region26: #{conv_block_forward.3} parent=23 // pred_check_branch
        %130 = sbr.rel (%p128) target = $region28
      $region27: #{conv_block_forward.3} parent=23 // pred_region
        %s131 = smul.u32 32, %s9
        %p132 = scmp.lt.s32.totalorder %s131, 63
        %s133 = scalar_select %p132, %s131, 63
        %s134 = smul.addr %s133, 4
        %s135 = scalar_lea.vmem %s0, %s134
        %s136 = smul.u32 32, %s9
      $region28: #{conv_block_forward.3} parent=23 // pred_fallthru
        _
    $region24: #{conv_block_forward.3} parent=5 // pred_fallthru
      _
    %p137 = scmp.le.s32.totalorder 1, %s9
    %p138 = scmp.lt.s32.totalorder %s9, 3
    %p139 = pnand %p137, %p138
    %p140 = pneg %p139
    // Predicated region
    $region29: #{conv_block_forward.3} parent=5 // pred_check
      _
    $region30: #{conv_block_forward.3} parent=5 // pred_check_branch
      %142 = sbr.rel (%p139) target = $region32
    $region31: #{conv_block_forward.3} parent=5 // pred_region
      %s143 = ssub.s32 %s9, 1
      %s144 = smul.u32 32, %s14
      %p145 = scmp.lt.s32.totalorder %s144, 63
      %s146 = scalar_select %p145, %s144, 63
      %s147 = smul.addr %s146, 4
      %s148 = scalar_lea.vmem %s0, %s147
      %p149 = pneg %p35
      %p150 = pneg %p32
      %p151 = pneg %p56
      %p152 = pneg %p53
      %p153 = pneg %p77
      %p154 = pneg %p74
      %p155 = pneg %p103
      %p156 = pneg %p100
      %s157 = smul.u32 32, %s14
      %p158 = scmp.lt.s32.totalorder %s157, 63
      %s159 = scalar_select %p158, %s157, 63
      %s160 = smul.addr %s159, 8
      %s161 = scalar_lea.vmem %s3, %s160
      %s162 = smul.u32 32, %s14
      %p163 = scmp.lt.s32.totalorder %s162, 63
      %s164 = scalar_select %p163, %s162, 63
      %s165 = smul.addr %s164, 4
      %s166 = scalar_lea.vmem %s0, %s165
      %s167 = smul.u32 32, %s14
      %s168 = smul.u32 32, %s14
      %p169 = scmp.lt.s32.totalorder %s168, 63
      %s170 = scalar_select %p169, %s168, 63
      %s171 = smul.addr %s170, 8
      %s172 = scalar_lea.vmem %s3, %s171
      %s173 = smul.u32 32, %s14
      %v174 = vld [vmem:[%s166] sm:$0xf]
      %v175 = vld [vmem:[%s166 + $0x4] sm:$0xf]
      %v176 = vld [vmem:[%s166 + $0x8] sm:$0xf]
      %v177 = vld [vmem:[%s166 + $0xc] sm:$0xf]
      %v178 = vld [vmem:[%s166 + $0x10] sm:$0xf]
      %v179 = vld [vmem:[%s166 + $0x14] sm:$0xf]
      %v180 = vld [vmem:[%s166 + $0x18] sm:$0xf]
      %v181 = vld [vmem:[%s166 + $0x1c] sm:$0xf]
      %v182 = vld [vmem:[%s166 + $0x20] sm:$0xf]
      %v183 = vld [vmem:[%s166 + $0x24] sm:$0xf]
      %v184 = vld [vmem:[%s166 + $0x28] sm:$0xf]
      %v185 = vld [vmem:[%s166 + $0x2c] sm:$0xf]
      %v186 = vld [vmem:[%s166 + $0x30] sm:$0xf]
      %v187 = vld [vmem:[%s166 + $0x34] sm:$0xf]
      %v188 = vld [vmem:[%s166 + $0x38] sm:$0xf]
      %v189 = vld [vmem:[%s166 + $0x3c] sm:$0xf]
      %v190 = vld [vmem:[%s166 + $0x40] sm:$0xf]
      %v191 = vld [vmem:[%s166 + $0x44] sm:$0xf]
      %v192 = vld [vmem:[%s166 + $0x48] sm:$0xf]
      %v193 = vld [vmem:[%s166 + $0x4c] sm:$0xf]
      %v194 = vld [vmem:[%s166 + $0x50] sm:$0xf]
      %v195 = vld [vmem:[%s166 + $0x54] sm:$0xf]
      %v196 = vld [vmem:[%s166 + $0x58] sm:$0xf]
      %v197 = vld [vmem:[%s166 + $0x5c] sm:$0xf]
      %v198 = vld [vmem:[%s166 + $0x60] sm:$0xf]
      %v199 = vld [vmem:[%s166 + $0x64] sm:$0xf]
      %v200 = vld [vmem:[%s166 + $0x68] sm:$0xf]
      %v201 = vld [vmem:[%s166 + $0x6c] sm:$0xf]
      %v202 = vld [vmem:[%s166 + $0x70] sm:$0xf]
      %v203 = vld [vmem:[%s166 + $0x74] sm:$0xf]
      %v204 = vld [vmem:[%s166 + $0x78] sm:$0xf]
      %v205 = vld [vmem:[%s166 + $0x7c] sm:$0xf]
      %v206 = vunpack.c.l.bf16 %v174
      %v207 = vunpack.c.l.bf16 %v175
      %v208 = vunpack.c.l.bf16 %v176
      %v209 = vunpack.c.l.bf16 %v177
      %v210 = vunpack.c.l.bf16 %v178
      %v211 = vunpack.c.l.bf16 %v179
      %v212 = vunpack.c.l.bf16 %v180
      %v213 = vunpack.c.l.bf16 %v181
      %v214 = vunpack.c.l.bf16 %v182
      %v215 = vunpack.c.l.bf16 %v183
      %v216 = vunpack.c.l.bf16 %v184
      %v217 = vunpack.c.l.bf16 %v185
      %v218 = vunpack.c.l.bf16 %v186
      %v219 = vunpack.c.l.bf16 %v187
      %v220 = vunpack.c.l.bf16 %v188
      %v221 = vunpack.c.l.bf16 %v189
      %v222 = vunpack.c.l.bf16 %v190
      %v223 = vunpack.c.l.bf16 %v191
      %v224 = vunpack.c.l.bf16 %v192
      %v225 = vunpack.c.l.bf16 %v193
      %v226 = vunpack.c.l.bf16 %v194
      %v227 = vunpack.c.l.bf16 %v195
      %v228 = vunpack.c.l.bf16 %v196
      %v229 = vunpack.c.l.bf16 %v197
      %v230 = vunpack.c.l.bf16 %v198
      %v231 = vunpack.c.l.bf16 %v199
      %v232 = vunpack.c.l.bf16 %v200
      %v233 = vunpack.c.l.bf16 %v201
      %v234 = vunpack.c.l.bf16 %v202
      %v235 = vunpack.c.l.bf16 %v203
      %v236 = vunpack.c.l.bf16 %v204
      %v237 = vunpack.c.l.bf16 %v205
      %v238 = vld [vmem:[%s1] sm:$0x1]
      %v240 = vlaneseq
      %v241 = vshrl.u32 %v240, 7
      %v242 = vsub.s32 0, %v241
      %v243 = vrot.slane %v238, %v242
      %v245 = vmul.f32 %v206, %v243
      %v246 = vmul.f32 %v207, %v243
      %v247 = vmul.f32 %v208, %v243
      %v248 = vmul.f32 %v209, %v243
      %v249 = vmul.f32 %v210, %v243
      %v250 = vmul.f32 %v211, %v243
      %v251 = vmul.f32 %v212, %v243
      %v252 = vmul.f32 %v213, %v243
      %v253 = vmul.f32 %v214, %v243
      %v254 = vmul.f32 %v215, %v243
      %v255 = vmul.f32 %v216, %v243
      %v256 = vmul.f32 %v217, %v243
      %v257 = vmul.f32 %v218, %v243
      %v258 = vmul.f32 %v219, %v243
      %v259 = vmul.f32 %v220, %v243
      %v260 = vmul.f32 %v221, %v243
      %v261 = vmul.f32 %v222, %v243
      %v262 = vmul.f32 %v223, %v243
      %v263 = vmul.f32 %v224, %v243
      %v264 = vmul.f32 %v225, %v243
      %v265 = vmul.f32 %v226, %v243
      %v266 = vmul.f32 %v227, %v243
      %v267 = vmul.f32 %v228, %v243
      %v268 = vmul.f32 %v229, %v243
      %v269 = vmul.f32 %v230, %v243
      %v270 = vmul.f32 %v231, %v243
      %v271 = vmul.f32 %v232, %v243
      %v272 = vmul.f32 %v233, %v243
      %v273 = vmul.f32 %v234, %v243
      %v274 = vmul.f32 %v235, %v243
      %v275 = vmul.f32 %v236, %v243
      %v276 = vmul.f32 %v237, %v243
      %v277 = vld [vmem:[%s2] sm:$0x1]
      %v279 = vlaneseq
      %v280 = vshrl.u32 %v279, 7
      %v281 = vsub.s32 0, %v280
      %v282 = vrot.slane %v277, %v281
      %v284 = vadd.f32 %v245, %v282
      %v285 = vadd.f32 %v246, %v282
      %v286 = vadd.f32 %v247, %v282
      %v287 = vadd.f32 %v248, %v282
      %v288 = vadd.f32 %v249, %v282
      %v289 = vadd.f32 %v250, %v282
      %v290 = vadd.f32 %v251, %v282
      %v291 = vadd.f32 %v252, %v282
      %v292 = vadd.f32 %v253, %v282
      %v293 = vadd.f32 %v254, %v282
      %v294 = vadd.f32 %v255, %v282
      %v295 = vadd.f32 %v256, %v282
      %v296 = vadd.f32 %v257, %v282
      %v297 = vadd.f32 %v258, %v282
      %v298 = vadd.f32 %v259, %v282
      %v299 = vadd.f32 %v260, %v282
      %v300 = vadd.f32 %v261, %v282
      %v301 = vadd.f32 %v262, %v282
      %v302 = vadd.f32 %v263, %v282
      %v303 = vadd.f32 %v264, %v282
      %v304 = vadd.f32 %v265, %v282
      %v305 = vadd.f32 %v266, %v282
      %v306 = vadd.f32 %v267, %v282
      %v307 = vadd.f32 %v268, %v282
      %v308 = vadd.f32 %v269, %v282
      %v309 = vadd.f32 %v270, %v282
      %v310 = vadd.f32 %v271, %v282
      %v311 = vadd.f32 %v272, %v282
      %v312 = vadd.f32 %v273, %v282
      %v313 = vadd.f32 %v274, %v282
      %v314 = vadd.f32 %v275, %v282
      %v315 = vadd.f32 %v276, %v282
      %vm316 = vcmp.ge.f32.partialorder %v284, 0.0
      %vm317 = vcmp.ge.f32.partialorder %v285, 0.0
      %vm318 = vcmp.ge.f32.partialorder %v286, 0.0
      %vm319 = vcmp.ge.f32.partialorder %v287, 0.0
      %vm320 = vcmp.ge.f32.partialorder %v288, 0.0
      %vm321 = vcmp.ge.f32.partialorder %v289, 0.0
      %vm322 = vcmp.ge.f32.partialorder %v290, 0.0
      %vm323 = vcmp.ge.f32.partialorder %v291, 0.0
      %vm324 = vcmp.ge.f32.partialorder %v292, 0.0
      %vm325 = vcmp.ge.f32.partialorder %v293, 0.0
      %vm326 = vcmp.ge.f32.partialorder %v294, 0.0
      %vm327 = vcmp.ge.f32.partialorder %v295, 0.0
      %vm328 = vcmp.ge.f32.partialorder %v296, 0.0
      %vm329 = vcmp.ge.f32.partialorder %v297, 0.0
      %vm330 = vcmp.ge.f32.partialorder %v298, 0.0
      %vm331 = vcmp.ge.f32.partialorder %v299, 0.0
      %vm332 = vcmp.ge.f32.partialorder %v300, 0.0
      %vm333 = vcmp.ge.f32.partialorder %v301, 0.0
      %vm334 = vcmp.ge.f32.partialorder %v302, 0.0
      %vm335 = vcmp.ge.f32.partialorder %v303, 0.0
      %vm336 = vcmp.ge.f32.partialorder %v304, 0.0
      %vm337 = vcmp.ge.f32.partialorder %v305, 0.0
      %vm338 = vcmp.ge.f32.partialorder %v306, 0.0
      %vm339 = vcmp.ge.f32.partialorder %v307, 0.0
      %vm340 = vcmp.ge.f32.partialorder %v308, 0.0
      %vm341 = vcmp.ge.f32.partialorder %v309, 0.0
      %vm342 = vcmp.ge.f32.partialorder %v310, 0.0
      %vm343 = vcmp.ge.f32.partialorder %v311, 0.0
      %vm344 = vcmp.ge.f32.partialorder %v312, 0.0
      %vm345 = vcmp.ge.f32.partialorder %v313, 0.0
      %vm346 = vcmp.ge.f32.partialorder %v314, 0.0
      %vm347 = vcmp.ge.f32.partialorder %v315, 0.0
      %v348 = vmul.f32 %v284, 0.2
      %v349 = vmul.f32 %v285, 0.2
      %v350 = vmul.f32 %v286, 0.2
      %v351 = vmul.f32 %v287, 0.2
      %v352 = vmul.f32 %v288, 0.2
      %v353 = vmul.f32 %v289, 0.2
      %v354 = vmul.f32 %v290, 0.2
      %v355 = vmul.f32 %v291, 0.2
      %v356 = vmul.f32 %v292, 0.2
      %v357 = vmul.f32 %v293, 0.2
      %v358 = vmul.f32 %v294, 0.2
      %v359 = vmul.f32 %v295, 0.2
      %v360 = vmul.f32 %v296, 0.2
      %v361 = vmul.f32 %v297, 0.2
      %v362 = vmul.f32 %v298, 0.2
      %v363 = vmul.f32 %v299, 0.2
      %v364 = vmul.f32 %v300, 0.2
      %v365 = vmul.f32 %v301, 0.2
      %v366 = vmul.f32 %v302, 0.2
      %v367 = vmul.f32 %v303, 0.2
      %v368 = vmul.f32 %v304, 0.2
      %v369 = vmul.f32 %v305, 0.2
      %v370 = vmul.f32 %v306, 0.2
      %v371 = vmul.f32 %v307, 0.2
      %v372 = vmul.f32 %v308, 0.2
      %v373 = vmul.f32 %v309, 0.2
      %v374 = vmul.f32 %v310, 0.2
      %v375 = vmul.f32 %v311, 0.2
      %v376 = vmul.f32 %v312, 0.2
      %v377 = vmul.f32 %v313, 0.2
      %v378 = vmul.f32 %v314, 0.2
      %v379 = vmul.f32 %v315, 0.2
      %v380 = vsel %vm316, %v284, %v348
      %v381 = vsel %vm317, %v285, %v349
      %v382 = vsel %vm318, %v286, %v350
      %v383 = vsel %vm319, %v287, %v351
      %v384 = vsel %vm320, %v288, %v352
      %v385 = vsel %vm321, %v289, %v353
      %v386 = vsel %vm322, %v290, %v354
      %v387 = vsel %vm323, %v291, %v355
      %v388 = vsel %vm324, %v292, %v356
      %v389 = vsel %vm325, %v293, %v357
      %v390 = vsel %vm326, %v294, %v358
      %v391 = vsel %vm327, %v295, %v359
      %v392 = vsel %vm328, %v296, %v360
      %v393 = vsel %vm329, %v297, %v361
      %v394 = vsel %vm330, %v298, %v362
      %v395 = vsel %vm331, %v299, %v363
      %v396 = vsel %vm332, %v300, %v364
      %v397 = vsel %vm333, %v301, %v365
      %v398 = vsel %vm334, %v302, %v366
      %v399 = vsel %vm335, %v303, %v367
      %v400 = vsel %vm336, %v304, %v368
      %v401 = vsel %vm337, %v305, %v369
      %v402 = vsel %vm338, %v306, %v370
      %v403 = vsel %vm339, %v307, %v371
      %v404 = vsel %vm340, %v308, %v372
      %v405 = vsel %vm341, %v309, %v373
      %v406 = vsel %vm342, %v310, %v374
      %v407 = vsel %vm343, %v311, %v375
      %v408 = vsel %vm344, %v312, %v376
      %v409 = vsel %vm345, %v313, %v377
      %v410 = vsel %vm346, %v314, %v378
      %v411 = vsel %vm347, %v315, %v379
      %412 = vst [vmem:[%s172] sm:$0xff] %v380
      %413 = vst [vmem:[%s172 + $0x8] sm:$0xff] %v381
      %414 = vst [vmem:[%s172 + $0x10] sm:$0xff] %v382
      %415 = vst [vmem:[%s172 + $0x18] sm:$0xff] %v383
      %416 = vst [vmem:[%s172 + $0x20] sm:$0xff] %v384
      %417 = vst [vmem:[%s172 + $0x28] sm:$0xff] %v385
      %418 = vst [vmem:[%s172 + $0x30] sm:$0xff] %v386
      %419 = vst [vmem:[%s172 + $0x38] sm:$0xff] %v387
      %420 = vst [vmem:[%s172 + $0x40] sm:$0xff] %v388
      %421 = vst [vmem:[%s172 + $0x48] sm:$0xff] %v389
      %422 = vst [vmem:[%s172 + $0x50] sm:$0xff] %v390
      %423 = vst [vmem:[%s172 + $0x58] sm:$0xff] %v391
      %424 = vst [vmem:[%s172 + $0x60] sm:$0xff] %v392
      %425 = vst [vmem:[%s172 + $0x68] sm:$0xff] %v393
      %426 = vst [vmem:[%s172 + $0x70] sm:$0xff] %v394
      %427 = vst [vmem:[%s172 + $0x78] sm:$0xff] %v395
      %428 = vst [vmem:[%s172 + $0x80] sm:$0xff] %v396
      %429 = vst [vmem:[%s172 + $0x88] sm:$0xff] %v397
      %430 = vst [vmem:[%s172 + $0x90] sm:$0xff] %v398
      %431 = vst [vmem:[%s172 + $0x98] sm:$0xff] %v399
      %432 = vst [vmem:[%s172 + $0xa0] sm:$0xff] %v400
      %433 = vst [vmem:[%s172 + $0xa8] sm:$0xff] %v401
      %434 = vst [vmem:[%s172 + $0xb0] sm:$0xff] %v402
      %435 = vst [vmem:[%s172 + $0xb8] sm:$0xff] %v403
      %436 = vst [vmem:[%s172 + $0xc0] sm:$0xff] %v404
      %437 = vst [vmem:[%s172 + $0xc8] sm:$0xff] %v405
      %438 = vst [vmem:[%s172 + $0xd0] sm:$0xff] %v406
      %439 = vst [vmem:[%s172 + $0xd8] sm:$0xff] %v407
      %440 = vst [vmem:[%s172 + $0xe0] sm:$0xff] %v408
      %441 = vst [vmem:[%s172 + $0xe8] sm:$0xff] %v409
      %442 = vst [vmem:[%s172 + $0xf0] sm:$0xff] %v410
      %443 = vst [vmem:[%s172 + $0xf8] sm:$0xff] %v411
      %s444 = smul.u32 32, %s14
      %p445 = scmp.lt.s32.totalorder %s444, 63
      %s446 = scalar_select %p445, %s444, 63
      %s447 = smul.addr %s446, 8
      %s448 = scalar_lea.vmem %s3, %s447
      // Predicated region
      $region33: #{conv_block_forward.3} parent=31 // pred_check
        %p449 = pneg %p100
      $region34: #{conv_block_forward.3} parent=31 // pred_check_branch
        %451 = sbr.rel (%p449) target = $region36
      $region35: #{conv_block_forward.3} parent=31 // pred_region
        %s452 = smul.u32 32, %s14
      $region36: #{conv_block_forward.3} parent=31 // pred_fallthru
        _
    $region32: #{conv_block_forward.3} parent=5 // pred_fallthru
      _
    %p453 = scmp.le.s32.totalorder 2, %s9
    // Predicated region
    $region37: #{conv_block_forward.3} parent=5 // pred_check
      %p454 = pneg %p453
    $region38: #{conv_block_forward.3} parent=5 // pred_check_branch
      %456 = sbr.rel (%p454) target = $region40
    $region39: #{conv_block_forward.3} parent=5 // pred_region
      %s457 = ssub.s32 %s9, 2
      // Predicated region
      $region41: #{conv_block_forward.3} parent=39 // pred_check
        %p458 = pneg %p106
      $region42: #{conv_block_forward.3} parent=39 // pred_check_branch
        %460 = sbr.rel (%p458) target = $region44
      $region43: #{conv_block_forward.3} parent=39 // pred_region
        %s461 = smul.u32 32, %s15
        %p462 = scmp.lt.s32.totalorder %s461, 63
        %s463 = scalar_select %p462, %s461, 63
        %s464 = smul.addr %s463, 8
        %s465 = scalar_lea.vmem %s3, %s464
      $region44: #{conv_block_forward.3} parent=39 // pred_fallthru
        _
    $region40: #{conv_block_forward.3} parent=5 // pred_fallthru
      _
  $region6: #{conv_block_forward.3} parent=0 // loop_footer
    %s13 = sadd.s32 1, %s9
  $region7: #{conv_block_forward.3} parent=0 // loop_footer_branch
    %8 = sbr.rel target = $region3
  $region8: #{conv_block_forward.3} parent=0 // loop_exit
    _

// kernel: conv_block_forward.2
$region0: #{conv_block_forward.2}
  #allocation0 [shape = 'u32[]', space=smem, size = 0x4, offset = 0x4, fixed_abs, tag = 'smem constant byte address 0x4 - core index']
  #allocation1 [shape = 'u32[144,128]{1,0:T(1,128)}', space=vmem, size = 0x12000, scoped, tag = 'internal scratch']
  %s0 = inlined_call_operand.vmem [shape: bf16[512,36], index: 0, kind: input, shape index: {}]
  %s1 = inlined_call_operand.vmem [shape: bf16[36,128], index: 1, kind: input, shape index: {}]
  %s2 = inlined_call_operand.vmem [shape: bf16[512,128], index: 2, kind: output, shape index: {0}]
  %s3 = inlined_call_operand.vmem [shape: f32[16,128], index: 3, kind: output, shape index: {1}]
  %s4 = inlined_call_operand.vmem [shape: f32[16,128], index: 4, kind: output, shape index: {2}]
  %5 = xla_tuple %s2, %s3, %s4
  %s6 = sld [smem:[#allocation0]]
  $region61: #{conv_block_forward.2} parent=0
    _
  %s8 = ssub.s32 1, %s6
  %s9 = scalar_select 0, %s8, %s6
  loop: start=0, step=1, limit=4
  $region2: #{conv_block_forward.2} parent=0 // loop_pre_header
    _
  $region3: #{conv_block_forward.2} parent=0 // loop_header
    %s11 = sphi 0, %s15
    %p12 = scmp.ge.s32.totalorder %s11, 4
    %s18 = sphi 0, %s30
    %s19 = sphi 0, %s26
    %s20 = sphi 0, %s18
    %s21 = sphi 0, %s19
    %s22 = sphi 0, %s20
    %s23 = sphi 0, %s21
    %s35 = sphi 0, %s37
    %s38 = sphi 0, %s35
    %s39 = sphi 0, %s38
    %s55 = sphi 0, %s39
    %s59 = sphi 0, %s59
    %s61 = sphi 0, %s59
    %s62 = sphi 0, %s61
    %s76 = sphi 0, %s62
    %s84 = sphi 0, %s86
    %s87 = sphi 0, %s84
    %s88 = sphi 0, %s87
    %s104 = sphi 0, %s88
    %s110 = sphi 0, %s112
    %s113 = sphi 0, %s110
    %s114 = sphi 0, %s113
    %s130 = sphi 0, %s114
    %s136 = sphi 0, %s138
    %s139 = sphi 0, %s136
    %s140 = sphi 0, %s139
    %s156 = sphi 0, %s140
  $region4: #{conv_block_forward.2} parent=0 // loop_header_branch
    %14 = sbr.rel (%p12) target = $region8
  $region5: #{conv_block_forward.2} parent=0 // loop_body
    %s16 = ssub.s32 %s11, 1
    %s17 = ssub.s32 %s11, 2
    %s24 = sadd.s32 1, %s19
    %p25 = scmp.ge.s32.totalorder %s24, 1
    %s26 = scalar_select %p25, 0, %s24
    %s27 = sadd.s32 1, %s18
    %s28 = scalar_select %p25, %s27, %s18
    %p29 = scmp.ge.s32.totalorder %s28, 2
    %s30 = scalar_select %p29, 0, %s28
    %s31 = sadd.s32 %s18, %s19
    %s32 = sadd.s32 %s30, %s26
    %s33 = ssub.s32 %s31, %s32
    %p34 = scmp.eq.s32.totalorder %s33, 0
    %s36 = sadd.s32 %s35, 1
    %s37 = scalar_select %p34, %s35, %s36
    %p40 = pneg %p34
    %p41 = scmp.eq.s32.totalorder %s11, 1
    %p42 = por %p40, %p41
    %p43 = scmp.ne.s32.totalorder %s35, %s38
    %p44 = scmp.eq.s32.totalorder %s11, 0
    %p45 = por %p43, %p44
    %p46 = scmp.ne.s32.totalorder %s35, %s38
    %p47 = scmp.eq.s32.totalorder %s16, 1
    %p48 = por %p46, %p47
    %p49 = scmp.ne.s32.totalorder %s38, %s39
    %p50 = scmp.eq.s32.totalorder %s16, 0
    %p51 = por %p49, %p50
    %p52 = scmp.ne.s32.totalorder %s38, %s39
    %p53 = scmp.eq.s32.totalorder %s17, 1
    %p54 = por %p52, %p53
    %p56 = scmp.ne.s32.totalorder %s39, %s55
    %p57 = scmp.eq.s32.totalorder %s17, 0
    %p58 = por %p56, %p57
    %s60 = sadd.s32 %s59, 1
    %p63 = scmp.eq.s32.totalorder %s11, 1
    %p64 = scmp.ne.s32.totalorder %s59, %s61
    %p65 = scmp.eq.s32.totalorder %s11, 0
    %p66 = por %p64, %p65
    %p67 = scmp.ne.s32.totalorder %s59, %s61
    %p68 = scmp.eq.s32.totalorder %s16, 1
    %p69 = por %p67, %p68
    %p70 = scmp.ne.s32.totalorder %s61, %s62
    %p71 = scmp.eq.s32.totalorder %s16, 0
    %p72 = por %p70, %p71
    %p73 = scmp.ne.s32.totalorder %s61, %s62
    %p74 = scmp.eq.s32.totalorder %s17, 1
    %p75 = por %p73, %p74
    %p77 = scmp.ne.s32.totalorder %s62, %s76
    %p78 = scmp.eq.s32.totalorder %s17, 0
    %p79 = por %p77, %p78
    %s80 = sadd.s32 %s18, %s19
    %s81 = sadd.s32 %s30, %s26
    %s82 = ssub.s32 %s80, %s81
    %p83 = scmp.eq.s32.totalorder %s82, 0
    %s85 = sadd.s32 %s84, 1
    %s86 = scalar_select %p83, %s84, %s85
    %p89 = pneg %p83
    %p90 = scmp.eq.s32.totalorder %s11, 1
    %p91 = por %p89, %p90
    %p92 = scmp.ne.s32.totalorder %s84, %s87
    %p93 = scmp.eq.s32.totalorder %s11, 0
    %p94 = por %p92, %p93
    %p95 = scmp.ne.s32.totalorder %s84, %s87
    %p96 = scmp.eq.s32.totalorder %s16, 1
    %p97 = por %p95, %p96
    %p98 = scmp.ne.s32.totalorder %s87, %s88
    %p99 = scmp.eq.s32.totalorder %s16, 0
    %p100 = por %p98, %p99
    %p101 = scmp.ne.s32.totalorder %s87, %s88
    %p102 = scmp.eq.s32.totalorder %s17, 1
    %p103 = por %p101, %p102
    %p105 = scmp.ne.s32.totalorder %s88, %s104
    %p106 = scmp.eq.s32.totalorder %s17, 0
    %p107 = por %p105, %p106
    %s108 = ssub.s32 %s18, %s30
    %p109 = scmp.eq.s32.totalorder %s108, 0
    %s111 = sadd.s32 %s110, 1
    %s112 = scalar_select %p109, %s110, %s111
    %p115 = pneg %p109
    %p116 = scmp.eq.s32.totalorder %s11, 1
    %p117 = por %p115, %p116
    %p118 = scmp.ne.s32.totalorder %s110, %s113
    %p119 = scmp.eq.s32.totalorder %s11, 0
    %p120 = por %p118, %p119
    %p121 = scmp.ne.s32.totalorder %s110, %s113
    %p122 = scmp.eq.s32.totalorder %s16, 1
    %p123 = por %p121, %p122
    %p124 = scmp.ne.s32.totalorder %s113, %s114
    %p125 = scmp.eq.s32.totalorder %s16, 0
    %p126 = por %p124, %p125
    %p127 = scmp.ne.s32.totalorder %s113, %s114
    %p128 = scmp.eq.s32.totalorder %s17, 1
    %p129 = por %p127, %p128
    %p131 = scmp.ne.s32.totalorder %s114, %s130
    %p132 = scmp.eq.s32.totalorder %s17, 0
    %p133 = por %p131, %p132
    %s134 = ssub.s32 %s18, %s30
    %p135 = scmp.eq.s32.totalorder %s134, 0
    %s137 = sadd.s32 %s136, 1
    %s138 = scalar_select %p135, %s136, %s137
    %p141 = pneg %p135
    %p142 = scmp.eq.s32.totalorder %s11, 1
    %p143 = por %p141, %p142
    %p144 = scmp.ne.s32.totalorder %s136, %s139
    %p145 = scmp.eq.s32.totalorder %s11, 0
    %p146 = por %p144, %p145
    %p147 = scmp.ne.s32.totalorder %s136, %s139
    %p148 = scmp.eq.s32.totalorder %s16, 1
    %p149 = por %p147, %p148
    %p150 = scmp.ne.s32.totalorder %s139, %s140
    %p151 = scmp.eq.s32.totalorder %s16, 0
    %p152 = por %p150, %p151
    %p153 = scmp.ne.s32.totalorder %s139, %s140
    %p154 = scmp.eq.s32.totalorder %s17, 1
    %p155 = por %p153, %p154
    %p157 = scmp.ne.s32.totalorder %s140, %s156
    %p158 = scmp.eq.s32.totalorder %s17, 0
    %p159 = por %p157, %p158
    %p160 = scmp.le.s32.totalorder 1, %s11
    %p161 = scmp.lt.s32.totalorder %s11, 3
    %p162 = pnand %p160, %p161
    %p163 = pneg %p162
    // Predicated region
    $region9: #{conv_block_forward.2} parent=5 // pred_check
      _
    $region10: #{conv_block_forward.2} parent=5 // pred_check_branch
      %165 = sbr.rel (%p162) target = $region12
    $region11: #{conv_block_forward.2} parent=5 // pred_region
      %s166 = ssub.s32 %s11, 1
      // Predicated region
      $region13: #{conv_block_forward.2} parent=11 // pred_check
        %p167 = pneg %p72
      $region14: #{conv_block_forward.2} parent=11 // pred_check_branch
        %169 = sbr.rel (%p167) target = $region16
      $region15: #{conv_block_forward.2} parent=11 // pred_region
        _
      $region16: #{conv_block_forward.2} parent=11 // pred_fallthru
        _
    $region12: #{conv_block_forward.2} parent=5 // pred_fallthru
      _
    %p170 = scmp.lt.s32.totalorder %s11, 2
    // Predicated region
    $region17: #{conv_block_forward.2} parent=5 // pred_check
      %p171 = pneg %p170
    $region18: #{conv_block_forward.2} parent=5 // pred_check_branch
      %173 = sbr.rel (%p171) target = $region20
    $region19: #{conv_block_forward.2} parent=5 // pred_region
      // Predicated region
      $region21: #{conv_block_forward.2} parent=19 // pred_check
        %p174 = pneg %p45
      $region22: #{conv_block_forward.2} parent=19 // pred_check_branch
        %176 = sbr.rel (%p174) target = $region24
      $region23: #{conv_block_forward.2} parent=19 // pred_region
        %s177 = sadd.s32 %s18, %s19
        %s178 = smul.u32 32, %s177
        %p179 = scmp.lt.s32.totalorder %s178, 63
        %s180 = scalar_select %p179, %s178, 63
        %s181 = smul.addr %s180, 4
        %s182 = scalar_lea.vmem %s0, %s181
        %s183 = sadd.s32 %s18, %s19
        %s184 = smul.u32 32, %s183
      $region24: #{conv_block_forward.2} parent=19 // pred_fallthru
        _
    $region20: #{conv_block_forward.2} parent=5 // pred_fallthru
      _
    %p185 = scmp.le.s32.totalorder 1, %s11
    %p186 = scmp.lt.s32.totalorder %s11, 3
    %p187 = pnand %p185, %p186
    %p188 = pneg %p187
    // Predicated region
    $region25: #{conv_block_forward.2} parent=5 // pred_check
      _
    $region26: #{conv_block_forward.2} parent=5 // pred_check_branch
      %190 = sbr.rel (%p187) target = $region28
    $region27: #{conv_block_forward.2} parent=5 // pred_region
      %s191 = ssub.s32 %s11, 1
      %s192 = sadd.s32 %s20, %s21
      %s193 = smul.u32 32, %s192
      %p194 = scmp.lt.s32.totalorder %s193, 63
      %s195 = scalar_select %p194, %s193, 63
      %s196 = smul.addr %s195, 4
      %s197 = scalar_lea.vmem %s0, %s196
      %p198 = pneg %p51
      %p199 = pneg %p48
      %p200 = pneg %p72
      %p201 = pneg %p69
      %p202 = pneg %p100
      %p203 = pneg %p97
      %s204 = sadd.s32 %s20, %s21
      %s205 = smul.u32 32, %s204
      %p206 = scmp.lt.s32.totalorder %s205, 63
      %s207 = scalar_select %p206, %s205, 63
      %s208 = smul.addr %s207, 4
      %s209 = scalar_lea.vmem %s2, %s208
      %p210 = pneg %p126
      %p211 = pneg %p123
      %p212 = scmp.lt.s32.totalorder %s20, 1
      %s213 = scalar_select %p212, %s20, 1
      %s214 = smul.addr %s213, 8
      %s215 = scalar_lea.vmem %s3, %s214
      %p216 = pneg %p152
      %p217 = pneg %p149
      %p218 = scmp.lt.s32.totalorder %s20, 1
      %s219 = scalar_select %p218, %s20, 1
      %s220 = smul.addr %s219, 8
      %s221 = scalar_lea.vmem %s4, %s220
      %s222 = sadd.s32 %s20, %s21
      %s223 = smul.u32 32, %s222
      %p224 = scmp.lt.s32.totalorder %s223, 63
      %s225 = scalar_select %p224, %s223, 63
      %s226 = smul.addr %s225, 4
      %s227 = scalar_lea.vmem %s0, %s226
      %s228 = sadd.s32 %s20, %s21
      %s229 = smul.u32 32, %s228
      %s230 = sadd.s32 %s20, %s21
      %s231 = smul.u32 32, %s230
      %p232 = scmp.lt.s32.totalorder %s231, 63
      %s233 = scalar_select %p232, %s231, 63
      %s234 = smul.addr %s233, 4
      %s235 = scalar_lea.vmem %s2, %s234
      %s236 = sadd.s32 %s20, %s21
      %s237 = smul.u32 32, %s236
      %p238 = scmp.lt.s32.totalorder %s20, 1
      %s239 = scalar_select %p238, %s20, 1
      %s240 = smul.addr %s239, 8
      %s241 = scalar_lea.vmem %s3, %s240
      %p242 = scmp.lt.s32.totalorder %s20, 1
      %s243 = scalar_select %p242, %s20, 1
      %s244 = smul.addr %s243, 8
      %s245 = scalar_lea.vmem %s4, %s244
      %p247 = scmp.eq.s32.totalorder %s21, 0
      // Predicated region
      $region29: #{conv_block_forward.2} parent=27 // pred_check
        %p248 = pneg %p247
      $region30: #{conv_block_forward.2} parent=27 // pred_check_branch
        %250 = sbr.rel (%p248) target = $region32
      $region31: #{conv_block_forward.2} parent=27 // pred_region
        %251 = vst [vmem:[%s241] sm:$0xff] 0.0
        %252 = vst [vmem:[%s245] sm:$0xff] 0.0
      $region32: #{conv_block_forward.2} parent=27 // pred_fallthru
        _
      %v253 = vld [vmem:[%s227] sm:$0xf]
      %v254 = vld [vmem:[%s227 + $0x4] sm:$0xf]
      %v255 = vld [vmem:[%s227 + $0x8] sm:$0xf]
      %v256 = vld [vmem:[%s227 + $0xc] sm:$0xf]
      %v257 = vld [vmem:[%s227 + $0x10] sm:$0xf]
      %v258 = vld [vmem:[%s227 + $0x14] sm:$0xf]
      %v259 = vld [vmem:[%s227 + $0x18] sm:$0xf]
      %v260 = vld [vmem:[%s227 + $0x1c] sm:$0xf]
      %v261 = vld [vmem:[%s227 + $0x20] sm:$0xf]
      %v262 = vld [vmem:[%s227 + $0x24] sm:$0xf]
      %v263 = vld [vmem:[%s227 + $0x28] sm:$0xf]
      %v264 = vld [vmem:[%s227 + $0x2c] sm:$0xf]
      %v265 = vld [vmem:[%s227 + $0x30] sm:$0xf]
      %v266 = vld [vmem:[%s227 + $0x34] sm:$0xf]
      %v267 = vld [vmem:[%s227 + $0x38] sm:$0xf]
      %v268 = vld [vmem:[%s227 + $0x3c] sm:$0xf]
      %v269 = vld [vmem:[%s227 + $0x40] sm:$0xf]
      %v270 = vld [vmem:[%s227 + $0x44] sm:$0xf]
      %v271 = vld [vmem:[%s227 + $0x48] sm:$0xf]
      %v272 = vld [vmem:[%s227 + $0x4c] sm:$0xf]
      %v273 = vld [vmem:[%s227 + $0x50] sm:$0xf]
      %v274 = vld [vmem:[%s227 + $0x54] sm:$0xf]
      %v275 = vld [vmem:[%s227 + $0x58] sm:$0xf]
      %v276 = vld [vmem:[%s227 + $0x5c] sm:$0xf]
      %v277 = vld [vmem:[%s227 + $0x60] sm:$0xf]
      %v278 = vld [vmem:[%s227 + $0x64] sm:$0xf]
      %v279 = vld [vmem:[%s227 + $0x68] sm:$0xf]
      %v280 = vld [vmem:[%s227 + $0x6c] sm:$0xf]
      %v281 = vld [vmem:[%s227 + $0x70] sm:$0xf]
      %v282 = vld [vmem:[%s227 + $0x74] sm:$0xf]
      %v283 = vld [vmem:[%s227 + $0x78] sm:$0xf]
      %v284 = vld [vmem:[%s227 + $0x7c] sm:$0xf]
      %v285 = vld [vmem:[%s1] sm:$0xf]
      %v286 = vld [vmem:[%s1 + $0x4] sm:$0xf]
      %v287 = vld [vmem:[%s1 + $0x8] sm:$0xf]
      %v288 = vld [vmem:[%s1 + $0xc] sm:$0xf]
      %v289 = vld [vmem:[%s1 + $0x10] sm:$0x3]
      %v322 = vunpack.c.l.b16 %v253
      %v323 = vunpack.c.l.b16 %v254
      %v324 = vunpack.c.l.b16 %v255
      %v325 = vunpack.c.l.b16 %v256
      %v326 = vunpack.c.l.b16 %v257
      %v327 = vunpack.c.l.b16 %v258
      %v328 = vunpack.c.l.b16 %v259
      %v329 = vunpack.c.l.b16 %v260
      %v330 = vunpack.c.l.b16 %v261
      %v331 = vunpack.c.l.b16 %v262
      %v332 = vunpack.c.l.b16 %v263
      %v333 = vunpack.c.l.b16 %v264
      %v334 = vunpack.c.l.b16 %v265
      %v335 = vunpack.c.l.b16 %v266
      %v336 = vunpack.c.l.b16 %v267
      %v337 = vunpack.c.l.b16 %v268
      %v338 = vunpack.c.l.b16 %v269
      %v339 = vunpack.c.l.b16 %v270
      %v340 = vunpack.c.l.b16 %v271
      %v341 = vunpack.c.l.b16 %v272
      %v342 = vunpack.c.l.b16 %v273
      %v343 = vunpack.c.l.b16 %v274
      %v344 = vunpack.c.l.b16 %v275
      %v345 = vunpack.c.l.b16 %v276
      %v346 = vunpack.c.l.b16 %v277
      %v347 = vunpack.c.l.b16 %v278
      %v348 = vunpack.c.l.b16 %v279
      %v349 = vunpack.c.l.b16 %v280
      %v350 = vunpack.c.l.b16 %v281
      %v351 = vunpack.c.l.b16 %v282
      %v352 = vunpack.c.l.b16 %v283
      %v353 = vunpack.c.l.b16 %v284
      %v354 = vpack.c.b16 %v323, %v322
      %v355 = vpack.c.b16 %v325, %v324
      %v356 = vpack.c.b16 %v327, %v326
      %v357 = vpack.c.b16 %v329, %v328
      %v358 = vpack.c.b16 %v331, %v330
      %v359 = vpack.c.b16 %v333, %v332
      %v360 = vpack.c.b16 %v335, %v334
      %v361 = vpack.c.b16 %v337, %v336
      %v362 = vpack.c.b16 %v339, %v338
      %v363 = vpack.c.b16 %v341, %v340
      %v364 = vpack.c.b16 %v343, %v342
      %v365 = vpack.c.b16 %v345, %v344
      %v366 = vpack.c.b16 %v347, %v346
      %v367 = vpack.c.b16 %v349, %v348
      %v368 = vpack.c.b16 %v351, %v350
      %v369 = vpack.c.b16 %v353, %v352
      %v375 = vunpack.c.l.b16 %v285
      %v376 = vunpack.c.l.b16 %v286
      %v377 = vunpack.c.l.b16 %v287
      %v378 = vunpack.c.l.b16 %v288
      %v379 = vunpack.c.l.b16 %v289
      %v380 = vpack.c.b16 %v376, %v375
      %v381 = vpack.c.b16 %v378, %v377
      %v382 = vpack.c.b16 %v379, %v379
      %vm385 = vcmask 293888
      %v387 = vsel %vm385, %v354, 0
      %v390 = vsel %vm385, %v355, 0
      %v393 = vsel %vm385, %v356, 0
      %v396 = vsel %vm385, %v357, 0
      %v399 = vsel %vm385, %v358, 0
      %v402 = vsel %vm385, %v359, 0
      %v405 = vsel %vm385, %v360, 0
      %v408 = vsel %vm385, %v361, 0
      %v411 = vsel %vm385, %v362, 0
      %v414 = vsel %vm385, %v363, 0
      %v417 = vsel %vm385, %v364, 0
      %v420 = vsel %vm385, %v365, 0
      %v423 = vsel %vm385, %v366, 0
      %v426 = vsel %vm385, %v367, 0
      %v429 = vsel %vm385, %v368, 0
      %v432 = vsel %vm385, %v369, 0
      %vm434 = vcmask 1041408
      %v436 = vsel %vm434, %v382, 0
      %438 = vmatprep.subr.bf16.mxu0 0
      %439 = vmatpush1.bf16.msra.mxu0 %v380
      %440 = vmatprep.subr.bf16.mxu0 0
      %441 = vmatpush1.bf16.msra.mxu0 %v381
      %442 = vmatprep.subr.bf16.mxu0 0
      %443 = vmatpush1.bf16.msra.mxu0 %v436
      %444 = vmatprep.subr.bf16.mxu0 0
      %445 = vmatpush1.bf16.msra.mxu0 0
      %446 = vmatprep.subr.bf16.mxu0 0
      %447 = vmatpush1.bf16.msra.mxu0 0
      %448 = vmatprep.subr.bf16.mxu0 0
      %449 = vmatpush1.bf16.msra.mxu0 0
      %450 = vmatprep.subr.bf16.mxu0 0
      %451 = vmatpush1.bf16.msra.mxu0 0
      %452 = vmatprep.subr.bf16.mxu0 0
      %453 = vmatpush1.bf16.msra.mxu0 0
      %454 = vmatprep.subr.bf16.mxu0 0
      %455 = vmatpush1.bf16.msra.mxu0 0
      %456 = vmatprep.subr.bf16.mxu0 0
      %457 = vmatpush1.bf16.msra.mxu0 0
      %458 = vmatprep.subr.bf16.mxu0 0
      %459 = vmatpush1.bf16.msra.mxu0 0
      %460 = vmatprep.subr.bf16.mxu0 0
      %461 = vmatpush1.bf16.msra.mxu0 0
      %462 = vmatprep.subr.bf16.mxu0 0
      %463 = vmatpush1.bf16.msra.mxu0 0
      %464 = vmatprep.subr.bf16.mxu0 0
      %465 = vmatpush1.bf16.msra.mxu0 0
      %466 = vmatprep.subr.bf16.mxu0 0
      %467 = vmatpush1.bf16.msra.mxu0 0
      %468 = vmatprep.subr.bf16.mxu0 0
      %469 = vmatpush1.bf16.msra.mxu0 0
      %470 = vmatprep.mubr.bf16.mxu0 0
      %471 = vmatmul.mubr.bf16.gmra.mrb[0].mxu0 %v387
      %v472 = vpop.f32.mrb[0].mxu0
      %v473 = vadd.f32 0.0, %v472
      %v474 = vpop.f32.mrb[0].mxu0
      %v475 = vpop.f32.mrb[0].mxu0
      %v476 = vadd.f32 0.0, %v475
      %v477 = vpop.f32.mrb[0].mxu0
      %478 = vmatprep.mubr.bf16.mxu0 0
      %479 = vmatmul.mubr.bf16.gmra.mrb[0].mxu0 %v390
      %v480 = vpop.f32.mrb[0].mxu0
      %v481 = vadd.f32 0.0, %v480
      %v482 = vpop.f32.mrb[0].mxu0
      %v483 = vpop.f32.mrb[0].mxu0
      %v484 = vadd.f32 0.0, %v483
      %v485 = vpop.f32.mrb[0].mxu0
      %486 = vmatprep.mubr.bf16.mxu0 0
      %487 = vmatmul.mubr.bf16.gmra.mrb[0].mxu0 %v393
      %v488 = vpop.f32.mrb[0].mxu0
      %v489 = vadd.f32 0.0, %v488
      %v490 = vpop.f32.mrb[0].mxu0
      %v491 = vpop.f32.mrb[0].mxu0
      %v492 = vadd.f32 0.0, %v491
      %v493 = vpop.f32.mrb[0].mxu0
      %494 = vmatprep.mubr.bf16.mxu0 0
      %495 = vmatmul.mubr.bf16.gmra.mrb[0].mxu0 %v396
      %v496 = vpop.f32.mrb[0].mxu0
      %v497 = vadd.f32 0.0, %v496
      %v498 = vpop.f32.mrb[0].mxu0
      %v499 = vpop.f32.mrb[0].mxu0
      %v500 = vadd.f32 0.0, %v499
      %v501 = vpop.f32.mrb[0].mxu0
      %502 = vmatprep.mubr.bf16.mxu0 0
      %503 = vmatmul.mubr.bf16.gmra.mrb[0].mxu0 %v399
      %v504 = vpop.f32.mrb[0].mxu0
      %v505 = vadd.f32 0.0, %v504
      %v506 = vpop.f32.mrb[0].mxu0
      %v507 = vpop.f32.mrb[0].mxu0
      %v508 = vadd.f32 0.0, %v507
      %v509 = vpop.f32.mrb[0].mxu0
      %510 = vmatprep.mubr.bf16.mxu0 0
      %511 = vmatmul.mubr.bf16.gmra.mrb[0].mxu0 %v402
      %v512 = vpop.f32.mrb[0].mxu0
      %v513 = vadd.f32 0.0, %v512
      %v514 = vpop.f32.mrb[0].mxu0
      %v515 = vpop.f32.mrb[0].mxu0
      %v516 = vadd.f32 0.0, %v515
      %v517 = vpop.f32.mrb[0].mxu0
      %518 = vmatprep.mubr.bf16.mxu0 0
      %519 = vmatmul.mubr.bf16.gmra.mrb[0].mxu0 %v405
      %v520 = vpop.f32.mrb[0].mxu0
      %v521 = vadd.f32 0.0, %v520
      %v522 = vpop.f32.mrb[0].mxu0
      %v523 = vpop.f32.mrb[0].mxu0
      %v524 = vadd.f32 0.0, %v523
      %v525 = vpop.f32.mrb[0].mxu0
      %526 = vmatprep.mubr.bf16.mxu0 0
      %527 = vmatmul.mubr.bf16.gmra.mrb[0].mxu0 %v408
      %v528 = vpop.f32.mrb[0].mxu0
      %v529 = vadd.f32 0.0, %v528
      %v530 = vpop.f32.mrb[0].mxu0
      %v531 = vpop.f32.mrb[0].mxu0
      %v532 = vadd.f32 0.0, %v531
      %v533 = vpop.f32.mrb[0].mxu0
      %534 = vmatprep.mubr.bf16.mxu0 0
      %535 = vmatmul.mubr.bf16.gmra.mrb[0].mxu0 %v411
      %v536 = vpop.f32.mrb[0].mxu0
      %v537 = vadd.f32 0.0, %v536
      %v538 = vpop.f32.mrb[0].mxu0
      %v539 = vpop.f32.mrb[0].mxu0
      %v540 = vadd.f32 0.0, %v539
      %v541 = vpop.f32.mrb[0].mxu0
      %542 = vmatprep.mubr.bf16.mxu0 0
      %543 = vmatmul.mubr.bf16.gmra.mrb[0].mxu0 %v414
      %v544 = vpop.f32.mrb[0].mxu0
      %v545 = vadd.f32 0.0, %v544
      %v546 = vpop.f32.mrb[0].mxu0
      %v547 = vpop.f32.mrb[0].mxu0
      %v548 = vadd.f32 0.0, %v547
      %v549 = vpop.f32.mrb[0].mxu0
      %550 = vmatprep.mubr.bf16.mxu0 0
      %551 = vmatmul.mubr.bf16.gmra.mrb[0].mxu0 %v417
      %v552 = vpop.f32.mrb[0].mxu0
      %v553 = vadd.f32 0.0, %v552
      %v554 = vpop.f32.mrb[0].mxu0
      %v555 = vpop.f32.mrb[0].mxu0
      %v556 = vadd.f32 0.0, %v555
      %v557 = vpop.f32.mrb[0].mxu0
      %558 = vmatprep.mubr.bf16.mxu0 0
      %559 = vmatmul.mubr.bf16.gmra.mrb[0].mxu0 %v420
      %v560 = vpop.f32.mrb[0].mxu0
      %v561 = vadd.f32 0.0, %v560
      %v562 = vpop.f32.mrb[0].mxu0
      %v563 = vpop.f32.mrb[0].mxu0
      %v564 = vadd.f32 0.0, %v563
      %v565 = vpop.f32.mrb[0].mxu0
      %566 = vmatprep.mubr.bf16.mxu0 0
      %567 = vmatmul.mubr.bf16.gmra.mrb[0].mxu0 %v423
      %v568 = vpop.f32.mrb[0].mxu0
      %v569 = vadd.f32 0.0, %v568
      %v570 = vpop.f32.mrb[0].mxu0
      %v571 = vpop.f32.mrb[0].mxu0
      %v572 = vadd.f32 0.0, %v571
      %v573 = vpop.f32.mrb[0].mxu0
      %574 = vmatprep.mubr.bf16.mxu0 0
      %575 = vmatmul.mubr.bf16.gmra.mrb[0].mxu0 %v426
      %v576 = vpop.f32.mrb[0].mxu0
      %v577 = vadd.f32 0.0, %v576
      %v578 = vpop.f32.mrb[0].mxu0
      %v579 = vpop.f32.mrb[0].mxu0
      %v580 = vadd.f32 0.0, %v579
      %v581 = vpop.f32.mrb[0].mxu0
      %582 = vmatprep.mubr.bf16.mxu0 0
      %583 = vmatmul.mubr.bf16.gmra.mrb[0].mxu0 %v429
      %v584 = vpop.f32.mrb[0].mxu0
      %v585 = vadd.f32 0.0, %v584
      %v586 = vpop.f32.mrb[0].mxu0
      %v587 = vpop.f32.mrb[0].mxu0
      %v588 = vadd.f32 0.0, %v587
      %v589 = vpop.f32.mrb[0].mxu0
      %590 = vmatprep.mubr.bf16.mxu0 0
      %591 = vmatmul.mubr.bf16.gmra.mrb[0].mxu0 %v432
      %v592 = vpop.f32.mrb[0].mxu0
      %v593 = vadd.f32 0.0, %v592
      %v594 = vpop.f32.mrb[0].mxu0
      %v595 = vpop.f32.mrb[0].mxu0
      %v596 = vadd.f32 0.0, %v595
      %v597 = vpop.f32.mrb[0].mxu0
      %598 = vdwg.mxu0
      %v599 = vpack.c.bf16 %v476, %v473
      %v600 = vpack.c.bf16 %v484, %v481
      %v601 = vpack.c.bf16 %v492, %v489
      %v602 = vpack.c.bf16 %v500, %v497
      %v603 = vpack.c.bf16 %v508, %v505
      %v604 = vpack.c.bf16 %v516, %v513
      %v605 = vpack.c.bf16 %v524, %v521
      %v606 = vpack.c.bf16 %v532, %v529
      %v607 = vpack.c.bf16 %v540, %v537
      %v608 = vpack.c.bf16 %v548, %v545
      %v609 = vpack.c.bf16 %v556, %v553
      %v610 = vpack.c.bf16 %v564, %v561
      %v611 = vpack.c.bf16 %v572, %v569
      %v612 = vpack.c.bf16 %v580, %v577
      %v613 = vpack.c.bf16 %v588, %v585
      %v614 = vpack.c.bf16 %v596, %v593
      %v631 = vunpack.c.l.b16 %v599
      %v632 = vunpack.c.h.b16 %v599
      %v633 = vunpack.c.l.b16 %v600
      %v634 = vunpack.c.h.b16 %v600
      %v635 = vunpack.c.l.b16 %v601
      %v636 = vunpack.c.h.b16 %v601
      %v637 = vunpack.c.l.b16 %v602
      %v638 = vunpack.c.h.b16 %v602
      %v639 = vunpack.c.l.b16 %v603
      %v640 = vunpack.c.h.b16 %v603
      %v641 = vunpack.c.l.b16 %v604
      %v642 = vunpack.c.h.b16 %v604
      %v643 = vunpack.c.l.b16 %v605
      %v644 = vunpack.c.h.b16 %v605
      %v645 = vunpack.c.l.b16 %v606
      %v646 = vunpack.c.h.b16 %v606
      %v647 = vunpack.c.l.b16 %v607
      %v648 = vunpack.c.h.b16 %v607
      %v649 = vunpack.c.l.b16 %v608
      %v650 = vunpack.c.h.b16 %v608
      %v651 = vunpack.c.l.b16 %v609
      %v652 = vunpack.c.h.b16 %v609
      %v653 = vunpack.c.l.b16 %v610
      %v654 = vunpack.c.h.b16 %v610
      %v655 = vunpack.c.l.b16 %v611
      %v656 = vunpack.c.h.b16 %v611
      %v657 = vunpack.c.l.b16 %v612
      %v658 = vunpack.c.h.b16 %v612
      %v659 = vunpack.c.l.b16 %v613
      %v660 = vunpack.c.h.b16 %v613
      %v661 = vunpack.c.l.b16 %v614
      %v662 = vunpack.c.h.b16 %v614
      %v663 = vpack.c.b16 %v631, %v631
      %v664 = vpack.c.b16 %v632, %v632
      %v665 = vpack.c.b16 %v633, %v633
      %v666 = vpack.c.b16 %v634, %v634
      %v667 = vpack.c.b16 %v635, %v635
      %v668 = vpack.c.b16 %v636, %v636
      %v669 = vpack.c.b16 %v637, %v637
      %v670 = vpack.c.b16 %v638, %v638
      %v671 = vpack.c.b16 %v639, %v639
      %v672 = vpack.c.b16 %v640, %v640
      %v673 = vpack.c.b16 %v641, %v641
      %v674 = vpack.c.b16 %v642, %v642
      %v675 = vpack.c.b16 %v643, %v643
      %v676 = vpack.c.b16 %v644, %v644
      %v677 = vpack.c.b16 %v645, %v645
      %v678 = vpack.c.b16 %v646, %v646
      %v679 = vpack.c.b16 %v647, %v647
      %v680 = vpack.c.b16 %v648, %v648
      %v681 = vpack.c.b16 %v649, %v649
      %v682 = vpack.c.b16 %v650, %v650
      %v683 = vpack.c.b16 %v651, %v651
      %v684 = vpack.c.b16 %v652, %v652
      %v685 = vpack.c.b16 %v653, %v653
      %v686 = vpack.c.b16 %v654, %v654
      %v687 = vpack.c.b16 %v655, %v655
      %v688 = vpack.c.b16 %v656, %v656
      %v689 = vpack.c.b16 %v657, %v657
      %v690 = vpack.c.b16 %v658, %v658
      %v691 = vpack.c.b16 %v659, %v659
      %v692 = vpack.c.b16 %v660, %v660
      %v693 = vpack.c.b16 %v661, %v661
      %v694 = vpack.c.b16 %v662, %v662
      %727 = vst [vmem:[%s235] sm:$0xf] %v663
      %728 = vst [vmem:[%s235 + $0x4] sm:$0xf] %v664
      %729 = vst [vmem:[%s235 + $0x8] sm:$0xf] %v665
      %730 = vst [vmem:[%s235 + $0xc] sm:$0xf] %v666
      %731 = vst [vmem:[%s235 + $0x10] sm:$0xf] %v667
      %732 = vst [vmem:[%s235 + $0x14] sm:$0xf] %v668
      %733 = vst [vmem:[%s235 + $0x18] sm:$0xf] %v669
      %734 = vst [vmem:[%s235 + $0x1c] sm:$0xf] %v670
      %735 = vst [vmem:[%s235 + $0x20] sm:$0xf] %v671
      %736 = vst [vmem:[%s235 + $0x24] sm:$0xf] %v672
      %737 = vst [vmem:[%s235 + $0x28] sm:$0xf] %v673
      %738 = vst [vmem:[%s235 + $0x2c] sm:$0xf] %v674
      %739 = vst [vmem:[%s235 + $0x30] sm:$0xf] %v675
      %740 = vst [vmem:[%s235 + $0x34] sm:$0xf] %v676
      %741 = vst [vmem:[%s235 + $0x38] sm:$0xf] %v677
      %742 = vst [vmem:[%s235 + $0x3c] sm:$0xf] %v678
      %743 = vst [vmem:[%s235 + $0x40] sm:$0xf] %v679
      %744 = vst [vmem:[%s235 + $0x44] sm:$0xf] %v680
      %745 = vst [vmem:[%s235 + $0x48] sm:$0xf] %v681
      %746 = vst [vmem:[%s235 + $0x4c] sm:$0xf] %v682
      %747 = vst [vmem:[%s235 + $0x50] sm:$0xf] %v683
      %748 = vst [vmem:[%s235 + $0x54] sm:$0xf] %v684
      %749 = vst [vmem:[%s235 + $0x58] sm:$0xf] %v685
      %750 = vst [vmem:[%s235 + $0x5c] sm:$0xf] %v686
      %751 = vst [vmem:[%s235 + $0x60] sm:$0xf] %v687
      %752 = vst [vmem:[%s235 + $0x64] sm:$0xf] %v688
      %753 = vst [vmem:[%s235 + $0x68] sm:$0xf] %v689
      %754 = vst [vmem:[%s235 + $0x6c] sm:$0xf] %v690
      %755 = vst [vmem:[%s235 + $0x70] sm:$0xf] %v691
      %756 = vst [vmem:[%s235 + $0x74] sm:$0xf] %v692
      %757 = vst [vmem:[%s235 + $0x78] sm:$0xf] %v693
      %758 = vst [vmem:[%s235 + $0x7c] sm:$0xf] %v694
      %v759 = vld [vmem:[%s241] sm:$0xff]
      %v760 = vadd.f32 %v473, %v476
      %v761 = vadd.f32 %v760, %v481
      %v762 = vadd.f32 %v761, %v484
      %v763 = vadd.f32 %v762, %v489
      %v764 = vadd.f32 %v763, %v492
      %v765 = vadd.f32 %v764, %v497
      %v766 = vadd.f32 %v765, %v500
      %v767 = vadd.f32 %v766, %v505
      %v768 = vadd.f32 %v767, %v508
      %v769 = vadd.f32 %v768, %v513
      %v770 = vadd.f32 %v769, %v516
      %v771 = vadd.f32 %v770, %v521
      %v772 = vadd.f32 %v771, %v524
      %v773 = vadd.f32 %v772, %v529
      %v774 = vadd.f32 %v773, %v532
      %v775 = vadd.f32 %v774, %v537
      %v776 = vadd.f32 %v775, %v540
      %v777 = vadd.f32 %v776, %v545
      %v778 = vadd.f32 %v777, %v548
      %v779 = vadd.f32 %v778, %v553
      %v780 = vadd.f32 %v779, %v556
      %v781 = vadd.f32 %v780, %v561
      %v782 = vadd.f32 %v781, %v564
      %v783 = vadd.f32 %v782, %v569
      %v784 = vadd.f32 %v783, %v572
      %v785 = vadd.f32 %v784, %v577
      %v786 = vadd.f32 %v785, %v580
      %v787 = vadd.f32 %v786, %v585
      %v788 = vadd.f32 %v787, %v588
      %v789 = vadd.f32 %v788, %v593
      %v790 = vadd.f32 %v789, %v596
      %v791 = vadd.f32 %v759, %v790
      %792 = vst [vmem:[%s241] sm:$0xff] %v791
      %v793 = vld [vmem:[%s245] sm:$0xff]
      %v794 = vmul.f32 %v473, %v473
      %v795 = vmul.f32 %v476, %v476
      %v796 = vmul.f32 %v481, %v481
      %v797 = vmul.f32 %v484, %v484
      %v798 = vmul.f32 %v489, %v489
      %v799 = vmul.f32 %v492, %v492
      %v800 = vmul.f32 %v497, %v497
      %v801 = vmul.f32 %v500, %v500
      %v802 = vmul.f32 %v505, %v505
      %v803 = vmul.f32 %v508, %v508
      %v804 = vmul.f32 %v513, %v513
      %v805 = vmul.f32 %v516, %v516
      %v806 = vmul.f32 %v521, %v521
      %v807 = vmul.f32 %v524, %v524
      %v808 = vmul.f32 %v529, %v529
      %v809 = vmul.f32 %v532, %v532
      %v810 = vmul.f32 %v537, %v537
      %v811 = vmul.f32 %v540, %v540
      %v812 = vmul.f32 %v545, %v545
      %v813 = vmul.f32 %v548, %v548
      %v814 = vmul.f32 %v553, %v553
      %v815 = vmul.f32 %v556, %v556
      %v816 = vmul.f32 %v561, %v561
      %v817 = vmul.f32 %v564, %v564
      %v818 = vmul.f32 %v569, %v569
      %v819 = vmul.f32 %v572, %v572
      %v820 = vmul.f32 %v577, %v577
      %v821 = vmul.f32 %v580, %v580
      %v822 = vmul.f32 %v585, %v585
      %v823 = vmul.f32 %v588, %v588
      %v824 = vmul.f32 %v593, %v593
      %v825 = vmul.f32 %v596, %v596
      %v826 = vadd.f32 %v794, %v795
      %v827 = vadd.f32 %v826, %v796
      %v828 = vadd.f32 %v827, %v797
      %v829 = vadd.f32 %v828, %v798
      %v830 = vadd.f32 %v829, %v799
      %v831 = vadd.f32 %v830, %v800
      %v832 = vadd.f32 %v831, %v801
      %v833 = vadd.f32 %v832, %v802
      %v834 = vadd.f32 %v833, %v803
      %v835 = vadd.f32 %v834, %v804
      %v836 = vadd.f32 %v835, %v805
      %v837 = vadd.f32 %v836, %v806
      %v838 = vadd.f32 %v837, %v807
      %v839 = vadd.f32 %v838, %v808
      %v840 = vadd.f32 %v839, %v809
      %v841 = vadd.f32 %v840, %v810
      %v842 = vadd.f32 %v841, %v811
      %v843 = vadd.f32 %v842, %v812
      %v844 = vadd.f32 %v843, %v813
      %v845 = vadd.f32 %v844, %v814
      %v846 = vadd.f32 %v845, %v815
      %v847 = vadd.f32 %v846, %v816
      %v848 = vadd.f32 %v847, %v817
      %v849 = vadd.f32 %v848, %v818
      %v850 = vadd.f32 %v849, %v819
      %v851 = vadd.f32 %v850, %v820
      %v852 = vadd.f32 %v851, %v821
      %v853 = vadd.f32 %v852, %v822
      %v854 = vadd.f32 %v853, %v823
      %v855 = vadd.f32 %v854, %v824
      %v856 = vadd.f32 %v855, %v825
      %v857 = vadd.f32 %v793, %v856
      %858 = vst [vmem:[%s245] sm:$0xff] %v857
      %s859 = sadd.s32 %s20, %s21
      %s860 = smul.u32 32, %s859
      %p861 = scmp.lt.s32.totalorder %s860, 63
      %s862 = scalar_select %p861, %s860, 63
      %s863 = smul.addr %s862, 4
      %s864 = scalar_lea.vmem %s2, %s863
      %p865 = scmp.lt.s32.totalorder %s20, 1
      %s866 = scalar_select %p865, %s20, 1
      %s867 = smul.addr %s866, 8
      %s868 = scalar_lea.vmem %s3, %s867
      %p869 = scmp.lt.s32.totalorder %s20, 1
      %s870 = scalar_select %p869, %s20, 1
      %s871 = smul.addr %s870, 8
      %s872 = scalar_lea.vmem %s4, %s871
      // Predicated region
      $region33: #{conv_block_forward.2} parent=27 // pred_check
        %p873 = pneg %p97
      $region34: #{conv_block_forward.2} parent=27 // pred_check_branch
        %875 = sbr.rel (%p873) target = $region36
      $region35: #{conv_block_forward.2} parent=27 // pred_region
        %s876 = sadd.s32 %s20, %s21
        %s877 = smul.u32 32, %s876
      $region36: #{conv_block_forward.2} parent=27 // pred_fallthru
        _
      // Predicated region
      $region37: #{conv_block_forward.2} parent=27 // pred_check
        %p878 = pneg %p123
      $region38: #{conv_block_forward.2} parent=27 // pred_check_branch
        %880 = sbr.rel (%p878) target = $region40
      $region39: #{conv_block_forward.2} parent=27 // pred_region
        _
      $region40: #{conv_block_forward.2} parent=27 // pred_fallthru
        _
      // Predicated region
      $region41: #{conv_block_forward.2} parent=27 // pred_check
        %p881 = pneg %p149
      $region42: #{conv_block_forward.2} parent=27 // pred_check_branch
        %883 = sbr.rel (%p881) target = $region44
      $region43: #{conv_block_forward.2} parent=27 // pred_region
        _
      $region44: #{conv_block_forward.2} parent=27 // pred_fallthru
        _
    $region28: #{conv_block_forward.2} parent=5 // pred_fallthru
      _
    %p884 = scmp.le.s32.totalorder 2, %s11
    // Predicated region
    $region45: #{conv_block_forward.2} parent=5 // pred_check
      %p885 = pneg %p884
    $region46: #{conv_block_forward.2} parent=5 // pred_check_branch
      %887 = sbr.rel (%p885) target = $region48
    $region47: #{conv_block_forward.2} parent=5 // pred_region
      %s888 = ssub.s32 %s11, 2
      // Predicated region
      $region49: #{conv_block_forward.2} parent=47 // pred_check
        %p889 = pneg %p103
      $region50: #{conv_block_forward.2} parent=47 // pred_check_branch
        %891 = sbr.rel (%p889) target = $region52
      $region51: #{conv_block_forward.2} parent=47 // pred_region
        %s892 = sadd.s32 %s22, %s23
        %s893 = smul.u32 32, %s892
        %p894 = scmp.lt.s32.totalorder %s893, 63
        %s895 = scalar_select %p894, %s893, 63
        %s896 = smul.addr %s895, 4
        %s897 = scalar_lea.vmem %s2, %s896
      $region52: #{conv_block_forward.2} parent=47 // pred_fallthru
        _
      // Predicated region
      $region53: #{conv_block_forward.2} parent=47 // pred_check
        %p898 = pneg %p129
      $region54: #{conv_block_forward.2} parent=47 // pred_check_branch
        %900 = sbr.rel (%p898) target = $region56
      $region55: #{conv_block_forward.2} parent=47 // pred_region
        %p901 = scmp.lt.s32.totalorder %s22, 1
        %s902 = scalar_select %p901, %s22, 1
        %s903 = smul.addr %s902, 8
        %s904 = scalar_lea.vmem %s3, %s903
      $region56: #{conv_block_forward.2} parent=47 // pred_fallthru
        _
      // Predicated region
      $region57: #{conv_block_forward.2} parent=47 // pred_check
        %p905 = pneg %p155
      $region58: #{conv_block_forward.2} parent=47 // pred_check_branch
        %907 = sbr.rel (%p905) target = $region60
      $region59: #{conv_block_forward.2} parent=47 // pred_region
        %p908 = scmp.lt.s32.totalorder %s22, 1
        %s909 = scalar_select %p908, %s22, 1
        %s910 = smul.addr %s909, 8
        %s911 = scalar_lea.vmem %s4, %s910
      $region60: #{conv_block_forward.2} parent=47 // pred_fallthru
        _
    $region48: #{conv_block_forward.2} parent=5 // pred_fallthru
      _
  $region6: #{conv_block_forward.2} parent=0 // loop_footer
    %s15 = sadd.s32 1, %s11
  $region7: #{conv_block_forward.2} parent=0 // loop_footer_branch
    %10 = sbr.rel target = $region3
  $region8: #{conv_block_forward.2} parent=0 // loop_exit
    _

</llo_original>
